<compile_context>
chip_gen: v7x
topology: tpu7x:2x2x1
jax: 0.10.0
libtpu: 0.0.40
codegen_flags: <defaults>
</compile_context>

<pallas_src>
import functools

import numpy as np
import jax
import jax.numpy as jnp
from jax.experimental import pallas as pl
from jax.experimental.pallas import tpu as pltpu


def _dwsep_kernel(x_ref, wdw_ref, wpw_ref, mask_ref, o_ref, *,
                  K, stride, pad, H, W, H_out, W_out, Cin, Cout, B_tile, S_pad):
    # x_ref:    (B_tile, Cin, H*W)     flat, lane-dense input
    # wdw_ref:  (Cin, K*K)             depthwise filter
    # wpw_ref:  (Cout, Cin)            pointwise 1x1 filter
    # mask_ref: (K, H*W)               per-kw column-validity mask (1.0 iff w + kw - pad in [0, W))
    # o_ref:    (B_tile, Cout, S_pad)  lane-dense output block (S_pad % 128 == 0)
    HW = H * W
    S_out = H_out * W_out

    # TODO(synk): on v6e/v7x keep bf16 activations in bf16 for the depthwise FMAs (accumulate
    # the pointwise in f32); v5e has no bf16 VPU so the f32 upcast must stay there.
    x = x_ref[...].astype(jnp.float32)
    wdw = wdw_ref[...].astype(jnp.float32)
    wpw = wpw_ref[...].astype(jnp.float32)
    masks = mask_ref[...]                                    # (K, HW), f32 in {0, 1}

    # --- depthwise: K*K static flat shifts, column-masked, per-channel scalar FMAs --------
    # A non-circular shift by d = dh*W + dw places x[b, c, (h+dh)*W + (w+dw)] in lane h*W+w;
    # rows that fall outside [0, H) shift past the array ends (zero-filled), and columns that
    # would wrap across a row boundary are zeroed by the per-dw mask.
    acc = jnp.zeros((B_tile, Cin, HW), jnp.float32)
    for kh in range(K):
        dh = kh - pad
        for kw in range(K):
            dw = kw - pad
            d = dh * W + dw
            if d == 0:
                shifted = x
            elif d > 0:
                shifted = jnp.concatenate(
                    [x[..., d:], jnp.zeros((B_tile, Cin, d), jnp.float32)], axis=-1)
            else:
                shifted = jnp.concatenate(
                    [jnp.zeros((B_tile, Cin, -d), jnp.float32), x[..., :HW + d]], axis=-1)
            if dw != 0:
                shifted = shifted * masks[kw:kw + 1, :]      # (1, HW) broadcast over (B, Cin)
            t = kh * K + kw
            acc = acc + shifted * wdw[:, t:t + 1]            # (Cin, 1) per-channel scalar FMA

    # --- select output geometry -------------------------------------------------------------
    if stride == 1 and H_out == H and W_out == W:
        dw_out = acc                                         # 'same' conv: already flat output
    else:
        # General stride / 'valid' geometry: one lane-slice per output row, concatenated.
        # TODO(synk): for large stride>1 configs this computes stride^2 extra FMAs above;
        # switch to per-tap strided gathers once the depthwise becomes VALU-bound.
        rows = []
        for ho in range(H_out):
            start = ho * stride * W
            rows.append(jax.lax.slice(
                acc, (0, 0, start),
                (B_tile, Cin, start + (W_out - 1) * stride + 1),
                (1, 1, stride)))
        dw_out = jnp.concatenate(rows, axis=-1)              # (B_tile, Cin, S_out)

    if S_pad != S_out:                                       # lane-pad so the store is unmasked
        dw_out = jnp.concatenate(
            [dw_out, jnp.zeros((B_tile, Cin, S_pad - S_out), jnp.float32)], axis=-1)

    # --- pointwise 1x1: Cin broadcast-FMAs on the VPU in the lane-dense layout -------------
    # TODO(synk): switch to an MXU jnp.dot (tile Cin/Cout to 128 on v5e / 256 on v6e+) once
    # real configs reach Cin/Cout ~128+.
    for b in range(B_tile):
        outb = jnp.zeros((Cout, S_pad), jnp.float32)
        for c in range(Cin):
            outb = outb + wpw[:, c:c + 1] * dw_out[b, c:c + 1, :]
        o_ref[b] = outb.astype(o_ref.dtype)


def _pick_b_tile(N, Cin, HW):
    """Largest divisor of N that keeps >= 2 grid steps (v7x: 2 TensorCores) and a modest
    VMEM footprint for the (double-buffered) input block."""
    vmem_rows = max(1, (4 << 20) // max(1, Cin * HW * 4))
    target = min(max(1, N // 2), vmem_rows)
    for d in range(target, 0, -1):
        if N % d == 0:
            return d
    return 1


@functools.partial(jax.jit, static_argnames=("stride", "padding"))
def depthwise_separable_conv(x_nchw, w_depthwise, w_pointwise, *, stride, padding):
    """x_nchw: (N, Cin, H, W);  w_depthwise: (Cin, 1, K, K);  w_pointwise: (Cout, Cin, 1, 1)."""
    N, Cin, H, W = x_nchw.shape
    K = w_depthwise.shape[-1]
    Cout = w_pointwise.shape[0]

    # Rare corner (padding > (K-1)//2): pre-pad once in the wrapper so every output anchor
    # stays inside the geometry covered by the in-kernel masked shifts.
    if 2 * padding > K - 1:
        x_nchw = jnp.pad(
            x_nchw, ((0, 0), (0, 0), (padding, padding), (padding, padding)))
        H, W = H + 2 * padding, W + 2 * padding
        padding = 0

    H_out = (H + 2 * padding - K) // stride + 1
    W_out = (W + 2 * padding - K) // stride + 1
    HW = H * W
    S_out = H_out * W_out
    S_pad = ((S_out + 127) // 128) * 128                     # lane-dense output stores

    B_tile = _pick_b_tile(N, Cin, HW)
    grid = (N // B_tile,)

    # Free reshapes (same memory order): no transposes, no activation padding in the wrapper.
    x_flat = x_nchw.reshape(N, Cin, HW)
    wdw = w_depthwise.reshape(Cin, K * K)
    wpw = w_pointwise.reshape(Cout, Cin)

    # Per-kw column-validity masks, built at trace time (numpy) and fed as a tiny input.
    col = np.arange(HW) % W
    mask_np = np.stack(
        [((col + (kw - padding) >= 0) & (col + (kw - padding) < W)).astype(np.float32)
         for kw in range(K)], axis=0)
    masks = jnp.asarray(mask_np)

    kernel = functools.partial(
        _dwsep_kernel, K=K, stride=stride, pad=padding, H=H, W=W,
        H_out=H_out, W_out=W_out, Cin=Cin, Cout=Cout, B_tile=B_tile, S_pad=S_pad)

    # TODO(synk): for realistic large configs (Cin, H, W >> these), add an H_out tile axis
    # with a (K-1)-row halo in the input index_map and set
    # pltpu.CompilerParams(vmem_limit_bytes=...) so blocks still double-buffer in v7x's 64 MiB.
    out = pl.pallas_call(
        kernel,
        out_shape=jax.ShapeDtypeStruct((N, Cout, S_pad), x_nchw.dtype),
        grid_spec=pltpu.PrefetchScalarGridSpec(
            num_scalar_prefetch=0,
            grid=grid,
            in_specs=[
                pl.BlockSpec((B_tile, Cin, HW), lambda n: (n, 0, 0)),
                pl.BlockSpec((Cin, K * K), lambda n: (0, 0)),
                pl.BlockSpec((Cout, Cin), lambda n: (0, 0)),
                pl.BlockSpec((K, HW), lambda n: (0, 0)),
            ],
            out_specs=pl.BlockSpec((B_tile, Cout, S_pad), lambda n: (n, 0, 0)),
        ),
        compiler_params=pltpu.CompilerParams(dimension_semantics=("parallel",)),
    )(x_flat, wdw, wpw, masks)

    if S_pad != S_out:
        out = out[..., :S_out]
    return out.reshape(N, Cout, H_out, W_out)


def _reference(x_nchw, w_depthwise, w_pointwise, *, stride, padding):
    Cin = x_nchw.shape[1]
    dw = jax.lax.conv_general_dilated(
        x_nchw, w_depthwise, window_strides=(stride, stride),
        padding=[(padding, padding), (padding, padding)],
        dimension_numbers=("NCHW", "OIHW", "NCHW"),
        feature_group_count=Cin,
    )
    return jax.lax.conv_general_dilated(
        dw, w_pointwise, window_strides=(1, 1), padding=[(0, 0), (0, 0)],
        dimension_numbers=("NCHW", "OIHW", "NCHW"),
    )


if __name__ == "__main__":
    # Module hyperparameters (consistent with DepthwiseSeparableConv.__init__):
    N, Cin, H, W = 2, 4, 16, 16
    Cout, K, stride, padding = 8, 3, 1, 1

    key = jax.random.PRNGKey(0)
    kx, kdw, kpw = jax.random.split(key, 3)
    x = jax.random.normal(kx, (N, Cin, H, W), dtype=jnp.float32)
    # Deterministic synthetic weights (same shapes as nn.Conv2d weights, bias=False).
    w_depthwise = jax.random.normal(kdw, (Cin, 1, K, K), dtype=jnp.float32) * 0.1
    w_pointwise = jax.random.normal(kpw, (Cout, Cin, 1, 1), dtype=jnp.float32) * 0.1

    out = depthwise_separable_conv(x, w_depthwise, w_pointwise, stride=stride, padding=padding)
    out = jax.block_until_ready(out)

    ref = _reference(x, w_depthwise, w_pointwise, stride=stride, padding=padding)
    H_out = (H + 2 * padding - K) // stride + 1
    W_out = (W + 2 * padding - K) // stride + 1
    assert out.shape == ref.shape == (N, Cout, H_out, W_out), (out.shape, ref.shape)
    assert jnp.allclose(out, ref, atol=1e-4, rtol=1e-4), float(jnp.max(jnp.abs(out - ref)))

    print("KERNEL_OK")
</pallas_src>

<mosaic_0001>
module attributes {stable_mosaic.version = 11 : i64} {
  func.func @_dwsep_kernel(%arg0: i32, %arg1: memref<1x4x256xf32, #tpu.memory_space<vmem>>, %arg2: memref<4x9xf32, #tpu.memory_space<vmem>>, %arg3: memref<8x4xf32, #tpu.memory_space<vmem>>, %arg4: memref<3x256xf32, #tpu.memory_space<vmem>>, %arg5: memref<1x8x256xf32, #tpu.memory_space<vmem>>) attributes {dimension_semantics = [#tpu.dimension_semantics<parallel>], iteration_bounds = array<i64: 2>, scalar_prefetch = 0 : i64, scratch_operands = 0 : i64, tpu.core_type = #tpu.core_type<tc>, window_params = [{transform_indices = @transform_0, window_bounds = array<i64: 1, 4, 256>}, {pipeline_mode = #tpu.pipeline_mode<synchronous>, transform_indices = @transform_1, window_bounds = array<i64: 4, 9>}, {pipeline_mode = #tpu.pipeline_mode<synchronous>, transform_indices = @transform_2, window_bounds = array<i64: 8, 4>}, {pipeline_mode = #tpu.pipeline_mode<synchronous>, transform_indices = @transform_3, window_bounds = array<i64: 3, 256>}, {transform_indices = @transform_4, window_bounds = array<i64: 1, 8, 256>}]} {
    %c0 = arith.constant 0 : index
    %c0_0 = arith.constant 0 : index
    %c0_1 = arith.constant 0 : index
    %0 = vector.load %arg1[%c0, %c0_0, %c0_1] : memref<1x4x256xf32, #tpu.memory_space<vmem>>, vector<1x4x256xf32>
    %c0_2 = arith.constant 0 : index
    %c0_3 = arith.constant 0 : index
    %1 = vector.load %arg2[%c0_2, %c0_3] : memref<4x9xf32, #tpu.memory_space<vmem>>, vector<4x9xf32>
    %c0_4 = arith.constant 0 : index
    %c0_5 = arith.constant 0 : index
    %2 = vector.load %arg3[%c0_4, %c0_5] : memref<8x4xf32, #tpu.memory_space<vmem>>, vector<8x4xf32>
    %c0_6 = arith.constant 0 : index
    %c0_7 = arith.constant 0 : index
    %3 = vector.load %arg4[%c0_6, %c0_7] : memref<3x256xf32, #tpu.memory_space<vmem>>, vector<3x256xf32>
    %cst = arith.constant 0.000000e+00 : f32
    %4 = vector.broadcast %cst : f32 to vector<1x4x256xf32>
    %cst_8 = arith.constant 0.000000e+00 : f32
    %5 = vector.broadcast %cst_8 : f32 to vector<1x4x17xf32>
    %6 = vector.extract_strided_slice %0 {offsets = [0, 0, 0], sizes = [1, 4, 239], strides = [1, 1, 1]} : vector<1x4x256xf32> to vector<1x4x239xf32>
    %7 = tpu.concatenate %5, %6 in 2 : vector<1x4x17xf32>, vector<1x4x239xf32> -> vector<1x4x256xf32>
    %8 = vector.extract_strided_slice %3 {offsets = [0, 0], sizes = [1, 256], strides = [1, 1]} : vector<3x256xf32> to vector<1x256xf32>
    %9 = vector.shape_cast %8 : vector<1x256xf32> to vector<1x1x256xf32>
    %10 = vector.broadcast %9 : vector<1x1x256xf32> to vector<1x4x256xf32>
    %11 = arith.mulf %7, %10 : vector<1x4x256xf32>
    %12 = vector.extract_strided_slice %1 {offsets = [0, 0], sizes = [4, 1], strides = [1, 1]} : vector<4x9xf32> to vector<4x1xf32>
    %13 = vector.shape_cast %12 : vector<4x1xf32> to vector<1x4x1xf32>
    %14 = vector.broadcast %13 : vector<1x4x1xf32> to vector<1x4x256xf32>
    %15 = arith.mulf %11, %14 : vector<1x4x256xf32>
    %16 = arith.addf %4, %15 : vector<1x4x256xf32>
    %cst_9 = arith.constant 0.000000e+00 : f32
    %17 = vector.broadcast %cst_9 : f32 to vector<1x4x16xf32>
    %18 = vector.extract_strided_slice %0 {offsets = [0, 0, 0], sizes = [1, 4, 240], strides = [1, 1, 1]} : vector<1x4x256xf32> to vector<1x4x240xf32>
    %19 = tpu.concatenate %17, %18 in 2 : vector<1x4x16xf32>, vector<1x4x240xf32> -> vector<1x4x256xf32>
    %20 = vector.extract_strided_slice %1 {offsets = [0, 1], sizes = [4, 1], strides = [1, 1]} : vector<4x9xf32> to vector<4x1xf32>
    %21 = vector.shape_cast %20 : vector<4x1xf32> to vector<1x4x1xf32>
    %22 = vector.broadcast %21 : vector<1x4x1xf32> to vector<1x4x256xf32>
    %23 = arith.mulf %19, %22 : vector<1x4x256xf32>
    %24 = arith.addf %16, %23 : vector<1x4x256xf32>
    %cst_10 = arith.constant 0.000000e+00 : f32
    %25 = vector.broadcast %cst_10 : f32 to vector<1x4x15xf32>
    %26 = vector.extract_strided_slice %0 {offsets = [0, 0, 0], sizes = [1, 4, 241], strides = [1, 1, 1]} : vector<1x4x256xf32> to vector<1x4x241xf32>
    %27 = tpu.concatenate %25, %26 in 2 : vector<1x4x15xf32>, vector<1x4x241xf32> -> vector<1x4x256xf32>
    %28 = vector.extract_strided_slice %3 {offsets = [2, 0], sizes = [1, 256], strides = [1, 1]} : vector<3x256xf32> to vector<1x256xf32>
    %29 = vector.shape_cast %28 : vector<1x256xf32> to vector<1x1x256xf32>
    %30 = vector.broadcast %29 : vector<1x1x256xf32> to vector<1x4x256xf32>
    %31 = arith.mulf %27, %30 : vector<1x4x256xf32>
    %32 = vector.extract_strided_slice %1 {offsets = [0, 2], sizes = [4, 1], strides = [1, 1]} : vector<4x9xf32> to vector<4x1xf32>
    %33 = vector.shape_cast %32 : vector<4x1xf32> to vector<1x4x1xf32>
    %34 = vector.broadcast %33 : vector<1x4x1xf32> to vector<1x4x256xf32>
    %35 = arith.mulf %31, %34 : vector<1x4x256xf32>
    %36 = arith.addf %24, %35 : vector<1x4x256xf32>
    %cst_11 = arith.constant 0.000000e+00 : f32
    %37 = vector.broadcast %cst_11 : f32 to vector<1x4x1xf32>
    %38 = vector.extract_strided_slice %0 {offsets = [0, 0, 0], sizes = [1, 4, 255], strides = [1, 1, 1]} : vector<1x4x256xf32> to vector<1x4x255xf32>
    %39 = tpu.concatenate %37, %38 in 2 : vector<1x4x1xf32>, vector<1x4x255xf32> -> vector<1x4x256xf32>
    %40 = vector.extract_strided_slice %3 {offsets = [0, 0], sizes = [1, 256], strides = [1, 1]} : vector<3x256xf32> to vector<1x256xf32>
    %41 = vector.shape_cast %40 : vector<1x256xf32> to vector<1x1x256xf32>
    %42 = vector.broadcast %41 : vector<1x1x256xf32> to vector<1x4x256xf32>
    %43 = arith.mulf %39, %42 : vector<1x4x256xf32>
    %44 = vector.extract_strided_slice %1 {offsets = [0, 3], sizes = [4, 1], strides = [1, 1]} : vector<4x9xf32> to vector<4x1xf32>
    %45 = vector.shape_cast %44 : vector<4x1xf32> to vector<1x4x1xf32>
    %46 = vector.broadcast %45 : vector<1x4x1xf32> to vector<1x4x256xf32>
    %47 = arith.mulf %43, %46 : vector<1x4x256xf32>
    %48 = arith.addf %36, %47 : vector<1x4x256xf32>
    %49 = vector.extract_strided_slice %1 {offsets = [0, 4], sizes = [4, 1], strides = [1, 1]} : vector<4x9xf32> to vector<4x1xf32>
    %50 = vector.shape_cast %49 : vector<4x1xf32> to vector<1x4x1xf32>
    %51 = vector.broadcast %50 : vector<1x4x1xf32> to vector<1x4x256xf32>
    %52 = arith.mulf %0, %51 : vector<1x4x256xf32>
    %53 = arith.addf %48, %52 : vector<1x4x256xf32>
    %54 = vector.extract_strided_slice %0 {offsets = [0, 0, 1], sizes = [1, 4, 255], strides = [1, 1, 1]} : vector<1x4x256xf32> to vector<1x4x255xf32>
    %cst_12 = arith.constant 0.000000e+00 : f32
    %55 = vector.broadcast %cst_12 : f32 to vector<1x4x1xf32>
    %56 = tpu.concatenate %54, %55 in 2 : vector<1x4x255xf32>, vector<1x4x1xf32> -> vector<1x4x256xf32>
    %57 = vector.extract_strided_slice %3 {offsets = [2, 0], sizes = [1, 256], strides = [1, 1]} : vector<3x256xf32> to vector<1x256xf32>
    %58 = vector.shape_cast %57 : vector<1x256xf32> to vector<1x1x256xf32>
    %59 = vector.broadcast %58 : vector<1x1x256xf32> to vector<1x4x256xf32>
    %60 = arith.mulf %56, %59 : vector<1x4x256xf32>
    %61 = vector.extract_strided_slice %1 {offsets = [0, 5], sizes = [4, 1], strides = [1, 1]} : vector<4x9xf32> to vector<4x1xf32>
    %62 = vector.shape_cast %61 : vector<4x1xf32> to vector<1x4x1xf32>
    %63 = vector.broadcast %62 : vector<1x4x1xf32> to vector<1x4x256xf32>
    %64 = arith.mulf %60, %63 : vector<1x4x256xf32>
    %65 = arith.addf %53, %64 : vector<1x4x256xf32>
    %66 = vector.extract_strided_slice %0 {offsets = [0, 0, 15], sizes = [1, 4, 241], strides = [1, 1, 1]} : vector<1x4x256xf32> to vector<1x4x241xf32>
    %cst_13 = arith.constant 0.000000e+00 : f32
    %67 = vector.broadcast %cst_13 : f32 to vector<1x4x15xf32>
    %68 = tpu.concatenate %66, %67 in 2 : vector<1x4x241xf32>, vector<1x4x15xf32> -> vector<1x4x256xf32>
    %69 = vector.extract_strided_slice %3 {offsets = [0, 0], sizes = [1, 256], strides = [1, 1]} : vector<3x256xf32> to vector<1x256xf32>
    %70 = vector.shape_cast %69 : vector<1x256xf32> to vector<1x1x256xf32>
    %71 = vector.broadcast %70 : vector<1x1x256xf32> to vector<1x4x256xf32>
    %72 = arith.mulf %68, %71 : vector<1x4x256xf32>
    %73 = vector.extract_strided_slice %1 {offsets = [0, 6], sizes = [4, 1], strides = [1, 1]} : vector<4x9xf32> to vector<4x1xf32>
    %74 = vector.shape_cast %73 : vector<4x1xf32> to vector<1x4x1xf32>
    %75 = vector.broadcast %74 : vector<1x4x1xf32> to vector<1x4x256xf32>
    %76 = arith.mulf %72, %75 : vector<1x4x256xf32>
    %77 = arith.addf %65, %76 : vector<1x4x256xf32>
    %78 = vector.extract_strided_slice %0 {offsets = [0, 0, 16], sizes = [1, 4, 240], strides = [1, 1, 1]} : vector<1x4x256xf32> to vector<1x4x240xf32>
    %cst_14 = arith.constant 0.000000e+00 : f32
    %79 = vector.broadcast %cst_14 : f32 to vector<1x4x16xf32>
    %80 = tpu.concatenate %78, %79 in 2 : vector<1x4x240xf32>, vector<1x4x16xf32> -> vector<1x4x256xf32>
    %81 = vector.extract_strided_slice %1 {offsets = [0, 7], sizes = [4, 1], strides = [1, 1]} : vector<4x9xf32> to vector<4x1xf32>
    %82 = vector.shape_cast %81 : vector<4x1xf32> to vector<1x4x1xf32>
    %83 = vector.broadcast %82 : vector<1x4x1xf32> to vector<1x4x256xf32>
    %84 = arith.mulf %80, %83 : vector<1x4x256xf32>
    %85 = arith.addf %77, %84 : vector<1x4x256xf32>
    %86 = vector.extract_strided_slice %0 {offsets = [0, 0, 17], sizes = [1, 4, 239], strides = [1, 1, 1]} : vector<1x4x256xf32> to vector<1x4x239xf32>
    %cst_15 = arith.constant 0.000000e+00 : f32
    %87 = vector.broadcast %cst_15 : f32 to vector<1x4x17xf32>
    %88 = tpu.concatenate %86, %87 in 2 : vector<1x4x239xf32>, vector<1x4x17xf32> -> vector<1x4x256xf32>
    %89 = vector.extract_strided_slice %3 {offsets = [2, 0], sizes = [1, 256], strides = [1, 1]} : vector<3x256xf32> to vector<1x256xf32>
    %90 = vector.shape_cast %89 : vector<1x256xf32> to vector<1x1x256xf32>
    %91 = vector.broadcast %90 : vector<1x1x256xf32> to vector<1x4x256xf32>
    %92 = arith.mulf %88, %91 : vector<1x4x256xf32>
    %93 = vector.extract_strided_slice %1 {offsets = [0, 8], sizes = [4, 1], strides = [1, 1]} : vector<4x9xf32> to vector<4x1xf32>
    %94 = vector.shape_cast %93 : vector<4x1xf32> to vector<1x4x1xf32>
    %95 = vector.broadcast %94 : vector<1x4x1xf32> to vector<1x4x256xf32>
    %96 = arith.mulf %92, %95 : vector<1x4x256xf32>
    %97 = arith.addf %85, %96 : vector<1x4x256xf32>
    %cst_16 = arith.constant 0.000000e+00 : f32
    %98 = vector.broadcast %cst_16 : f32 to vector<8x256xf32>
    %99 = vector.extract_strided_slice %2 {offsets = [0, 0], sizes = [8, 1], strides = [1, 1]} : vector<8x4xf32> to vector<8x1xf32>
    %100 = vector.extract_strided_slice %97 {offsets = [0, 0, 0], sizes = [1, 1, 256], strides = [1, 1, 1]} : vector<1x4x256xf32> to vector<1x1x256xf32>
    %101 = vector.shape_cast %100 : vector<1x1x256xf32> to vector<1x256xf32>
    %102 = vector.broadcast %99 : vector<8x1xf32> to vector<8x256xf32>
    %103 = vector.broadcast %101 : vector<1x256xf32> to vector<8x256xf32>
    %104 = arith.mulf %102, %103 : vector<8x256xf32>
    %105 = arith.addf %98, %104 : vector<8x256xf32>
    %106 = vector.extract_strided_slice %2 {offsets = [0, 1], sizes = [8, 1], strides = [1, 1]} : vector<8x4xf32> to vector<8x1xf32>
    %107 = vector.extract_strided_slice %97 {offsets = [0, 1, 0], sizes = [1, 1, 256], strides = [1, 1, 1]} : vector<1x4x256xf32> to vector<1x1x256xf32>
    %108 = vector.shape_cast %107 : vector<1x1x256xf32> to vector<1x256xf32>
    %109 = vector.broadcast %106 : vector<8x1xf32> to vector<8x256xf32>
    %110 = vector.broadcast %108 : vector<1x256xf32> to vector<8x256xf32>
    %111 = arith.mulf %109, %110 : vector<8x256xf32>
    %112 = arith.addf %105, %111 : vector<8x256xf32>
    %113 = vector.extract_strided_slice %2 {offsets = [0, 2], sizes = [8, 1], strides = [1, 1]} : vector<8x4xf32> to vector<8x1xf32>
    %114 = vector.extract_strided_slice %97 {offsets = [0, 2, 0], sizes = [1, 1, 256], strides = [1, 1, 1]} : vector<1x4x256xf32> to vector<1x1x256xf32>
    %115 = vector.shape_cast %114 : vector<1x1x256xf32> to vector<1x256xf32>
    %116 = vector.broadcast %113 : vector<8x1xf32> to vector<8x256xf32>
    %117 = vector.broadcast %115 : vector<1x256xf32> to vector<8x256xf32>
    %118 = arith.mulf %116, %117 : vector<8x256xf32>
    %119 = arith.addf %112, %118 : vector<8x256xf32>
    %120 = vector.extract_strided_slice %2 {offsets = [0, 3], sizes = [8, 1], strides = [1, 1]} : vector<8x4xf32> to vector<8x1xf32>
    %121 = vector.extract_strided_slice %97 {offsets = [0, 3, 0], sizes = [1, 1, 256], strides = [1, 1, 1]} : vector<1x4x256xf32> to vector<1x1x256xf32>
    %122 = vector.shape_cast %121 : vector<1x1x256xf32> to vector<1x256xf32>
    %123 = vector.broadcast %120 : vector<8x1xf32> to vector<8x256xf32>
    %124 = vector.broadcast %122 : vector<1x256xf32> to vector<8x256xf32>
    %125 = arith.mulf %123, %124 : vector<8x256xf32>
    %126 = arith.addf %119, %125 : vector<8x256xf32>
    %c0_17 = arith.constant 0 : index
    %c0_18 = arith.constant 0 : index
    %c0_19 = arith.constant 0 : index
    %127 = vector.load %arg5[%c0_17, %c0_18, %c0_19] : memref<1x8x256xf32, #tpu.memory_space<vmem>>, vector<1x8x256xf32>
    %128 = vector.shape_cast %127 : vector<1x8x256xf32> to vector<8x256xf32>
    %129 = vector.shape_cast %126 : vector<8x256xf32> to vector<1x8x256xf32>
    tpu.vector_store %arg5[%c0_17, %c0_18, %c0_19], %129 {strides = array<i32>} : memref<1x8x256xf32, #tpu.memory_space<vmem>>, vector<1x8x256xf32>,
    return
  }
  func.func @transform_0(%arg0: i32) -> (i32, i32, i32) {
    %c0_i32 = arith.constant 0 : i32
    %c0_i32_0 = arith.constant 0 : i32
    %c0_i32_1 = arith.constant 0 : i32
    return %arg0, %c0_i32, %c0_i32_0 : i32, i32, i32
  }
  func.func @transform_1(%arg0: i32) -> (i32, i32) {
    %c0_i32 = arith.constant 0 : i32
    %c0_i32_0 = arith.constant 0 : i32
    %c0_i32_1 = arith.constant 0 : i32
    return %c0_i32, %c0_i32_0 : i32, i32
  }
  func.func @transform_2(%arg0: i32) -> (i32, i32) {
    %c0_i32 = arith.constant 0 : i32
    %c0_i32_0 = arith.constant 0 : i32
    %c0_i32_1 = arith.constant 0 : i32
    return %c0_i32, %c0_i32_0 : i32, i32
  }
  func.func @transform_3(%arg0: i32) -> (i32, i32) {
    %c0_i32 = arith.constant 0 : i32
    %c0_i32_0 = arith.constant 0 : i32
    %c0_i32_1 = arith.constant 0 : i32
    return %c0_i32, %c0_i32_0 : i32, i32
  }
  func.func @transform_4(%arg0: i32) -> (i32, i32, i32) {
    %c0_i32 = arith.constant 0 : i32
    %c0_i32_0 = arith.constant 0 : i32
    %c0_i32_1 = arith.constant 0 : i32
    return %arg0, %c0_i32, %c0_i32_0 : i32, i32, i32
  }
}

</mosaic_0001>

<llo_original>
// kernel: depthwise_separable_conv.1
$region0: #{depthwise_separable_conv.1}
  #allocation0 [shape = 'u32[]', space=smem, size = 0x4, offset = 0x4, fixed_abs, tag = 'smem constant byte address 0x4 - core index']
  #allocation1 [shape = 'u32[144,128]{1,0:T(1,128)}', space=vmem, size = 0x12000, scoped, tag = 'internal scratch']
  %s0 = inlined_call_operand.vmem [shape: f32[2,4,256], index: 0, kind: input, shape index: {}]
  %s1 = inlined_call_operand.vmem [shape: f32[4,9], index: 1, kind: input, shape index: {}]
  %s2 = inlined_call_operand.vmem [shape: f32[8,4], index: 2, kind: input, shape index: {}]
  %s3 = inlined_call_operand.vmem [shape: f32[3,256], index: 3, kind: input, shape index: {}]
  %s4 = inlined_call_operand.vmem [shape: f32[2,8,256], index: 4, kind: output, shape index: {}]
  %s5 = sld [smem:[#allocation0]]
  $region49: #{depthwise_separable_conv.1} parent=0
    _
  %s7 = ssub.s32 1, %s5
  %s8 = scalar_select 0, %s7, %s5
  loop: start=0, step=1, limit=4
  $region2: #{depthwise_separable_conv.1} parent=0 // loop_pre_header
    _
  $region3: #{depthwise_separable_conv.1} parent=0 // loop_header
    %s10 = sphi 0, %s14
    %p11 = scmp.ge.s32.totalorder %s10, 4
    %s20 = sphi 0, %s22
    %s23 = sphi 0, %s20
    %s24 = sphi 0, %s23
    %s40 = sphi 0, %s24
    %s44 = sphi 0, %s44
    %s46 = sphi 0, %s44
    %s47 = sphi 0, %s46
    %s61 = sphi 0, %s47
    %s65 = sphi 0, %s65
    %s67 = sphi 0, %s65
    %s68 = sphi 0, %s67
    %s82 = sphi 0, %s68
    %s86 = sphi 0, %s86
    %s88 = sphi 0, %s86
    %s89 = sphi 0, %s88
    %s103 = sphi 0, %s89
    %s109 = sphi 0, %s111
    %s112 = sphi 0, %s109
    %s113 = sphi 0, %s112
    %s129 = sphi 0, %s113
  $region4: #{depthwise_separable_conv.1} parent=0 // loop_header_branch
    %13 = sbr.rel (%p11) target = $region8
  $region5: #{depthwise_separable_conv.1} parent=0 // loop_body
    %s15 = ssub.s32 %s10, 1
    %s16 = ssub.s32 %s10, 2
    %s17 = sadd.s32 %s10, 1
    %s18 = ssub.s32 %s10, %s17
    %p19 = scmp.eq.s32.totalorder %s18, 0
    %s21 = sadd.s32 %s20, 1
    %s22 = scalar_select %p19, %s20, %s21
    %p25 = pneg %p19
    %p26 = scmp.eq.s32.totalorder %s10, 1
    %p27 = por %p25, %p26
    %p28 = scmp.ne.s32.totalorder %s20, %s23
    %p29 = scmp.eq.s32.totalorder %s10, 0
    %p30 = por %p28, %p29
    %p31 = scmp.ne.s32.totalorder %s20, %s23
    %p32 = scmp.eq.s32.totalorder %s15, 1
    %p33 = por %p31, %p32
    %p34 = scmp.ne.s32.totalorder %s23, %s24
    %p35 = scmp.eq.s32.totalorder %s15, 0
    %p36 = por %p34, %p35
    %p37 = scmp.ne.s32.totalorder %s23, %s24
    %p38 = scmp.eq.s32.totalorder %s16, 1
    %p39 = por %p37, %p38
    %p41 = scmp.ne.s32.totalorder %s24, %s40
    %p42 = scmp.eq.s32.totalorder %s16, 0
    %p43 = por %p41, %p42
    %s45 = sadd.s32 %s44, 1
    %p48 = scmp.eq.s32.totalorder %s10, 1
    %p49 = scmp.ne.s32.totalorder %s44, %s46
    %p50 = scmp.eq.s32.totalorder %s10, 0
    %p51 = por %p49, %p50
    %p52 = scmp.ne.s32.totalorder %s44, %s46
    %p53 = scmp.eq.s32.totalorder %s15, 1
    %p54 = por %p52, %p53
    %p55 = scmp.ne.s32.totalorder %s46, %s47
    %p56 = scmp.eq.s32.totalorder %s15, 0
    %p57 = por %p55, %p56
    %p58 = scmp.ne.s32.totalorder %s46, %s47
    %p59 = scmp.eq.s32.totalorder %s16, 1
    %p60 = por %p58, %p59
    %p62 = scmp.ne.s32.totalorder %s47, %s61
    %p63 = scmp.eq.s32.totalorder %s16, 0
    %p64 = por %p62, %p63
    %s66 = sadd.s32 %s65, 1
    %p69 = scmp.eq.s32.totalorder %s10, 1
    %p70 = scmp.ne.s32.totalorder %s65, %s67
    %p71 = scmp.eq.s32.totalorder %s10, 0
    %p72 = por %p70, %p71
    %p73 = scmp.ne.s32.totalorder %s65, %s67
    %p74 = scmp.eq.s32.totalorder %s15, 1
    %p75 = por %p73, %p74
    %p76 = scmp.ne.s32.totalorder %s67, %s68
    %p77 = scmp.eq.s32.totalorder %s15, 0
    %p78 = por %p76, %p77
    %p79 = scmp.ne.s32.totalorder %s67, %s68
    %p80 = scmp.eq.s32.totalorder %s16, 1
    %p81 = por %p79, %p80
    %p83 = scmp.ne.s32.totalorder %s68, %s82
    %p84 = scmp.eq.s32.totalorder %s16, 0
    %p85 = por %p83, %p84
    %s87 = sadd.s32 %s86, 1
    %p90 = scmp.eq.s32.totalorder %s10, 1
    %p91 = scmp.ne.s32.totalorder %s86, %s88
    %p92 = scmp.eq.s32.totalorder %s10, 0
    %p93 = por %p91, %p92
    %p94 = scmp.ne.s32.totalorder %s86, %s88
    %p95 = scmp.eq.s32.totalorder %s15, 1
    %p96 = por %p94, %p95
    %p97 = scmp.ne.s32.totalorder %s88, %s89
    %p98 = scmp.eq.s32.totalorder %s15, 0
    %p99 = por %p97, %p98
    %p100 = scmp.ne.s32.totalorder %s88, %s89
    %p101 = scmp.eq.s32.totalorder %s16, 1
    %p102 = por %p100, %p101
    %p104 = scmp.ne.s32.totalorder %s89, %s103
    %p105 = scmp.eq.s32.totalorder %s16, 0
    %p106 = por %p104, %p105
    %s107 = ssub.s32 %s10, %s17
    %p108 = scmp.eq.s32.totalorder %s107, 0
    %s110 = sadd.s32 %s109, 1
    %s111 = scalar_select %p108, %s109, %s110
    %p114 = pneg %p108
    %p115 = scmp.eq.s32.totalorder %s10, 1
    %p116 = por %p114, %p115
    %p117 = scmp.ne.s32.totalorder %s109, %s112
    %p118 = scmp.eq.s32.totalorder %s10, 0
    %p119 = por %p117, %p118
    %p120 = scmp.ne.s32.totalorder %s109, %s112
    %p121 = scmp.eq.s32.totalorder %s15, 1
    %p122 = por %p120, %p121
    %p123 = scmp.ne.s32.totalorder %s112, %s113
    %p124 = scmp.eq.s32.totalorder %s15, 0
    %p125 = por %p123, %p124
    %p126 = scmp.ne.s32.totalorder %s112, %s113
    %p127 = scmp.eq.s32.totalorder %s16, 1
    %p128 = por %p126, %p127
    %p130 = scmp.ne.s32.totalorder %s113, %s129
    %p131 = scmp.eq.s32.totalorder %s16, 0
    %p132 = por %p130, %p131
    %p133 = scmp.le.s32.totalorder 1, %s10
    %p134 = scmp.lt.s32.totalorder %s10, 3
    %p135 = pnand %p133, %p134
    %p136 = pneg %p135
    // Predicated region
    $region9: #{depthwise_separable_conv.1} parent=5 // pred_check
      _
    $region10: #{depthwise_separable_conv.1} parent=5 // pred_check_branch
      %138 = sbr.rel (%p135) target = $region12
    $region11: #{depthwise_separable_conv.1} parent=5 // pred_region
      %s139 = ssub.s32 %s10, 1
      // Predicated region
      $region13: #{depthwise_separable_conv.1} parent=11 // pred_check
        %p140 = pneg %p57
      $region14: #{depthwise_separable_conv.1} parent=11 // pred_check_branch
        %142 = sbr.rel (%p140) target = $region16
      $region15: #{depthwise_separable_conv.1} parent=11 // pred_region
        _
      $region16: #{depthwise_separable_conv.1} parent=11 // pred_fallthru
        _
      // Predicated region
      $region17: #{depthwise_separable_conv.1} parent=11 // pred_check
        %p143 = pneg %p78
      $region18: #{depthwise_separable_conv.1} parent=11 // pred_check_branch
        %145 = sbr.rel (%p143) target = $region20
      $region19: #{depthwise_separable_conv.1} parent=11 // pred_region
        _
      $region20: #{depthwise_separable_conv.1} parent=11 // pred_fallthru
        _
      // Predicated region
      $region21: #{depthwise_separable_conv.1} parent=11 // pred_check
        %p146 = pneg %p99
      $region22: #{depthwise_separable_conv.1} parent=11 // pred_check_branch
        %148 = sbr.rel (%p146) target = $region24
      $region23: #{depthwise_separable_conv.1} parent=11 // pred_region
        _
      $region24: #{depthwise_separable_conv.1} parent=11 // pred_fallthru
        _
    $region12: #{depthwise_separable_conv.1} parent=5 // pred_fallthru
      _
    %p149 = scmp.lt.s32.totalorder %s10, 2
    // Predicated region
    $region25: #{depthwise_separable_conv.1} parent=5 // pred_check
      %p150 = pneg %p149
    $region26: #{depthwise_separable_conv.1} parent=5 // pred_check_branch
      %152 = sbr.rel (%p150) target = $region28
    $region27: #{depthwise_separable_conv.1} parent=5 // pred_region
      // Predicated region
      $region29: #{depthwise_separable_conv.1} parent=27 // pred_check
        %p153 = pneg %p30
      $region30: #{depthwise_separable_conv.1} parent=27 // pred_check_branch
        %155 = sbr.rel (%p153) target = $region32
      $region31: #{depthwise_separable_conv.1} parent=27 // pred_region
        %p156 = scmp.lt.s32.totalorder %s10, 1
        %s157 = scalar_select %p156, %s10, 1
        %s158 = smul.addr %s157, 2
        %s159 = smul.addr %s158, 4
        %s160 = scalar_lea.vmem %s0, %s159
      $region32: #{depthwise_separable_conv.1} parent=27 // pred_fallthru
        _
    $region28: #{depthwise_separable_conv.1} parent=5 // pred_fallthru
      _
    %p161 = scmp.le.s32.totalorder 1, %s10
    %p162 = scmp.lt.s32.totalorder %s10, 3
    %p163 = pnand %p161, %p162
    %p164 = pneg %p163
    // Predicated region
    $region33: #{depthwise_separable_conv.1} parent=5 // pred_check
      _
    $region34: #{depthwise_separable_conv.1} parent=5 // pred_check_branch
      %166 = sbr.rel (%p163) target = $region36
    $region35: #{depthwise_separable_conv.1} parent=5 // pred_region
      %s167 = ssub.s32 %s10, 1
      %p168 = scmp.lt.s32.totalorder %s15, 1
      %s169 = scalar_select %p168, %s15, 1
      %s170 = smul.addr %s169, 2
      %s171 = smul.addr %s170, 4
      %s172 = scalar_lea.vmem %s0, %s171
      %p173 = pneg %p36
      %p174 = pneg %p33
      %p175 = pneg %p57
      %p176 = pneg %p54
      %p177 = pneg %p78
      %p178 = pneg %p75
      %p179 = pneg %p99
      %p180 = pneg %p96
      %p181 = pneg %p125
      %p182 = pneg %p122
      %p183 = scmp.lt.s32.totalorder %s15, 1
      %s184 = scalar_select %p183, %s15, 1
      %s185 = smul.addr %s184, 2
      %s186 = smul.addr %s185, 8
      %s187 = scalar_lea.vmem %s4, %s186
      %p188 = scmp.lt.s32.totalorder %s15, 1
      %s189 = scalar_select %p188, %s15, 1
      %s190 = smul.addr %s189, 2
      %s191 = smul.addr %s190, 4
      %s192 = scalar_lea.vmem %s0, %s191
      %p193 = scmp.lt.s32.totalorder %s15, 1
      %s194 = scalar_select %p193, %s15, 1
      %s195 = smul.addr %s194, 2
      %s196 = smul.addr %s195, 8
      %s197 = scalar_lea.vmem %s4, %s196
      %v198 = vld [vmem:[%s192] sm:$0xff]
      %v199 = vld [vmem:[%s1] sm:$0xf]
      %v200 = vld [vmem:[%s2] sm:$0xff]
      %v201 = vld [vmem:[%s3] sm:$0x77]
      %v203 = vcombine.high %v198, %v198
      %204 = vrot.lane.b32.xlu0 %v198, 17
      %v205 = vpop.permute.xlu0 %204
      %206 = vrot.lane.b32.xlu0 %v203, 17
      %v207 = vpop.permute.xlu0 %206
      %vm208 = vcmask 138240
      %v209 = vsel %vm208, %v205, %v207
      %v212 = vsel %vm208, 0.0, %v205
      %v214 = vlaneseq
      %v215 = vshrl.u32 %v214, 7
      %v216 = vsub.s32 0, %v215
      %v217 = vrot.slane %v201, %v216
      %v218 = vlaneseq
      %v219 = vshrl.u32 %v218, 7
      %v220 = vsub.s32 4, %v219
      %v221 = vrot.slane %v201, %v220
      %v224 = vlaneseq
      %v225 = vshrl.u32 %v224, 7
      %v226 = vsub.s32 0, %v225
      %v227 = vrot.slane %v217, %v226
      %v228 = vlaneseq
      %v229 = vshrl.u32 %v228, 7
      %v230 = vsub.s32 0, %v229
      %v231 = vrot.slane %v221, %v230
      %v232 = vmul.f32 %v212, %v227
      %v233 = vmul.f32 %v209, %v231
      %235 = vset.pattern.permute.xlu0 0
      %236 = vperm.xlu0 %235, %v199
      %v237 = vpop.permute.xlu0 %236
      %v239 = vmul.f32 %v232, %v237
      %v240 = vmul.f32 %v233, %v237
      %v241 = vadd.f32 %v239, 0.0
      %v242 = vadd.f32 %v240, 0.0
      %243 = vrot.lane.b32.xlu0 %v198, 16
      %v244 = vpop.permute.xlu0 %243
      %245 = vrot.lane.b32.xlu0 %v203, 16
      %v246 = vpop.permute.xlu0 %245
      %vm247 = vcmask 130048
      %v248 = vsel %vm247, %v244, %v246
      %v251 = vsel %vm247, 0.0, %v244
      %252 = vset.pattern.permute.xlu0 1
      %253 = vperm.xlu0 %252, %v199
      %v254 = vpop.permute.xlu0 %253
      %v256 = vmul.f32 %v251, %v254
      %v257 = vmul.f32 %v248, %v254
      %v258 = vadd.f32 %v241, %v256
      %v259 = vadd.f32 %v242, %v257
      %260 = vrot.lane.b32.xlu0 %v198, 15
      %v261 = vpop.permute.xlu0 %260
      %262 = vrot.lane.b32.xlu0 %v203, 15
      %v263 = vpop.permute.xlu0 %262
      %vm264 = vcmask 121856
      %v265 = vsel %vm264, %v261, %v263
      %v268 = vsel %vm264, 0.0, %v261
      %v269 = vlaneseq
      %v270 = vshrl.u32 %v269, 7
      %v271 = vsub.s32 2, %v270
      %v272 = vrot.slane %v201, %v271
      %v273 = vlaneseq
      %v274 = vshrl.u32 %v273, 7
      %v275 = vsub.s32 6, %v274
      %v276 = vrot.slane %v201, %v275
      %v279 = vlaneseq
      %v280 = vshrl.u32 %v279, 7
      %v281 = vsub.s32 2, %v280
      %v282 = vrot.slane %v272, %v281
      %v283 = vlaneseq
      %v284 = vshrl.u32 %v283, 7
      %v285 = vsub.s32 2, %v284
      %v286 = vrot.slane %v276, %v285
      %v287 = vmul.f32 %v268, %v282
      %v288 = vmul.f32 %v265, %v286
      %289 = vset.pattern.permute.xlu0 2
      %290 = vperm.xlu0 %289, %v199
      %v291 = vpop.permute.xlu0 %290
      %v293 = vmul.f32 %v287, %v291
      %v294 = vmul.f32 %v288, %v291
      %v295 = vadd.f32 %v258, %v293
      %v296 = vadd.f32 %v259, %v294
      %297 = vrot.lane.b32.xlu0 %v198, 1
      %v298 = vpop.permute.xlu0 %297
      %299 = vrot.lane.b32.xlu0 %v203, 1
      %v300 = vpop.permute.xlu0 %299
      %vm301 = vcmask 7168
      %v302 = vsel %vm301, %v298, %v300
      %v305 = vsel %vm301, 0.0, %v298
      %v306 = vmul.f32 %v305, %v227
      %v307 = vmul.f32 %v302, %v231
      %308 = vset.pattern.permute.xlu0 3
      %309 = vperm.xlu0 %308, %v199
      %v310 = vpop.permute.xlu0 %309
      %v312 = vmul.f32 %v306, %v310
      %v313 = vmul.f32 %v307, %v310
      %v314 = vadd.f32 %v295, %v312
      %v315 = vadd.f32 %v296, %v313
      %316 = vset.pattern.permute.xlu0 4
      %317 = vperm.xlu0 %316, %v199
      %v318 = vpop.permute.xlu0 %317
      %v320 = vunpack.c.l.s4 839922192
      %v321 = vunpack.c.0.s8 %v320
      %v322 = vlaneseq
      %v323 = vshrl.u32 %v322, 7
      %v324 = vsub.s32 %v321, %v323
      %v325 = vrot.slane %v318, %v324
      %v327 = vmul.f32 %v198, %v325
      %v329 = vcombine.high %v327, %v327
      %v331 = vadd.f32 %v314, %v327
      %v332 = vadd.f32 %v315, %v329
      %333 = vrot.lane.b32.xlu0 %v198, 127
      %v334 = vpop.permute.xlu0 %333
      %335 = vrot.lane.b32.xlu0 %v203, 127
      %v336 = vpop.permute.xlu0 %335
      %vm337 = vcmask 1039360
      %v338 = vsel %vm337, %v334, %v336
      %v341 = vsel %vm337, %v336, 0.0
      %v342 = vmul.f32 %v338, %v282
      %v343 = vmul.f32 %v341, %v286
      %344 = vset.pattern.permute.xlu0 5
      %345 = vperm.xlu0 %344, %v199
      %v346 = vpop.permute.xlu0 %345
      %v348 = vmul.f32 %v342, %v346
      %v349 = vmul.f32 %v343, %v346
      %v350 = vadd.f32 %v331, %v348
      %v351 = vadd.f32 %v332, %v349
      %352 = vrot.lane.b32.xlu0 %v198, 113
      %v353 = vpop.permute.xlu0 %352
      %354 = vrot.lane.b32.xlu0 %v203, 113
      %v355 = vpop.permute.xlu0 %354
      %vm356 = vcmask 924672
      %v357 = vsel %vm356, %v353, %v355
      %v360 = vsel %vm356, %v355, 0.0
      %v361 = vmul.f32 %v357, %v227
      %v362 = vmul.f32 %v360, %v231
      %363 = vset.pattern.permute.xlu0 6
      %364 = vperm.xlu0 %363, %v199
      %v365 = vpop.permute.xlu0 %364
      %v367 = vmul.f32 %v361, %v365
      %v368 = vmul.f32 %v362, %v365
      %v369 = vadd.f32 %v350, %v367
      %v370 = vadd.f32 %v351, %v368
      %371 = vrot.lane.b32.xlu0 %v198, 112
      %v372 = vpop.permute.xlu0 %371
      %373 = vrot.lane.b32.xlu0 %v203, 112
      %v374 = vpop.permute.xlu0 %373
      %vm375 = vcmask 916480
      %v376 = vsel %vm375, %v372, %v374
      %v379 = vsel %vm375, %v374, 0.0
      %380 = vset.pattern.permute.xlu0 7
      %381 = vperm.xlu0 %380, %v199
      %v382 = vpop.permute.xlu0 %381
      %v384 = vmul.f32 %v376, %v382
      %v385 = vmul.f32 %v379, %v382
      %v386 = vadd.f32 %v369, %v384
      %v387 = vadd.f32 %v370, %v385
      %388 = vrot.lane.b32.xlu0 %v198, 111
      %v389 = vpop.permute.xlu0 %388
      %390 = vrot.lane.b32.xlu0 %v203, 111
      %v391 = vpop.permute.xlu0 %390
      %vm392 = vcmask 908288
      %v393 = vsel %vm392, %v389, %v391
      %v396 = vsel %vm392, %v391, 0.0
      %v397 = vmul.f32 %v393, %v282
      %v398 = vmul.f32 %v396, %v286
      %399 = vset.pattern.permute.xlu0 8
      %400 = vperm.xlu0 %399, %v199
      %v401 = vpop.permute.xlu0 %400
      %v403 = vmul.f32 %v397, %v401
      %v404 = vmul.f32 %v398, %v401
      %v405 = vadd.f32 %v386, %v403
      %v406 = vadd.f32 %v387, %v404
      %408 = vset.pattern.permute.xlu0 0
      %409 = vperm.xlu0 %408, %v200
      %v410 = vpop.permute.xlu0 %409
      %v412 = vlaneseq
      %v413 = vshrl.u32 %v412, 7
      %v414 = vsub.s32 0, %v413
      %v415 = vrot.slane %v405, %v414
      %v416 = vlaneseq
      %v417 = vshrl.u32 %v416, 7
      %v418 = vsub.s32 0, %v417
      %v419 = vrot.slane %v406, %v418
      %v420 = vmul.f32 %v410, %v415
      %v421 = vmul.f32 %v410, %v419
      %v422 = vadd.f32 %v420, 0.0
      %v423 = vadd.f32 %v421, 0.0
      %424 = vset.pattern.permute.xlu0 1
      %425 = vperm.xlu0 %424, %v200
      %v426 = vpop.permute.xlu0 %425
      %v428 = vlaneseq
      %v429 = vshrl.u32 %v428, 7
      %v430 = vsub.s32 1, %v429
      %v431 = vrot.slane %v405, %v430
      %v432 = vlaneseq
      %v433 = vshrl.u32 %v432, 7
      %v434 = vsub.s32 1, %v433
      %v435 = vrot.slane %v406, %v434
      %v436 = vmul.f32 %v426, %v431
      %v437 = vmul.f32 %v426, %v435
      %v438 = vadd.f32 %v422, %v436
      %v439 = vadd.f32 %v423, %v437
      %440 = vset.pattern.permute.xlu0 2
      %441 = vperm.xlu0 %440, %v200
      %v442 = vpop.permute.xlu0 %441
      %v444 = vlaneseq
      %v445 = vshrl.u32 %v444, 7
      %v446 = vsub.s32 2, %v445
      %v447 = vrot.slane %v405, %v446
      %v448 = vlaneseq
      %v449 = vshrl.u32 %v448, 7
      %v450 = vsub.s32 2, %v449
      %v451 = vrot.slane %v406, %v450
      %v452 = vmul.f32 %v442, %v447
      %v453 = vmul.f32 %v442, %v451
      %v454 = vadd.f32 %v438, %v452
      %v455 = vadd.f32 %v439, %v453
      %456 = vset.pattern.permute.xlu0 3
      %457 = vperm.xlu0 %456, %v200
      %v458 = vpop.permute.xlu0 %457
      %v460 = vlaneseq
      %v461 = vshrl.u32 %v460, 7
      %v462 = vsub.s32 3, %v461
      %v463 = vrot.slane %v405, %v462
      %v464 = vlaneseq
      %v465 = vshrl.u32 %v464, 7
      %v466 = vsub.s32 3, %v465
      %v467 = vrot.slane %v406, %v466
      %v468 = vmul.f32 %v458, %v463
      %v469 = vmul.f32 %v458, %v467
      %v470 = vadd.f32 %v454, %v468
      %v471 = vadd.f32 %v455, %v469
      %472 = vst [vmem:[%s197] sm:$0xff] %v470
      %473 = vst [vmem:[%s197 + $0x8] sm:$0xff] %v471
      %p474 = scmp.lt.s32.totalorder %s15, 1
      %s475 = scalar_select %p474, %s15, 1
      %s476 = smul.addr %s475, 2
      %s477 = smul.addr %s476, 8
      %s478 = scalar_lea.vmem %s4, %s477
      // Predicated region
      $region37: #{depthwise_separable_conv.1} parent=35 // pred_check
        %p479 = pneg %p122
      $region38: #{depthwise_separable_conv.1} parent=35 // pred_check_branch
        %481 = sbr.rel (%p479) target = $region40
      $region39: #{depthwise_separable_conv.1} parent=35 // pred_region
        _
      $region40: #{depthwise_separable_conv.1} parent=35 // pred_fallthru
        _
    $region36: #{depthwise_separable_conv.1} parent=5 // pred_fallthru
      _
    %p482 = scmp.le.s32.totalorder 2, %s10
    // Predicated region
    $region41: #{depthwise_separable_conv.1} parent=5 // pred_check
      %p483 = pneg %p482
    $region42: #{depthwise_separable_conv.1} parent=5 // pred_check_branch
      %485 = sbr.rel (%p483) target = $region44
    $region43: #{depthwise_separable_conv.1} parent=5 // pred_region
      %s486 = ssub.s32 %s10, 2
      // Predicated region
      $region45: #{depthwise_separable_conv.1} parent=43 // pred_check
        %p487 = pneg %p128
      $region46: #{depthwise_separable_conv.1} parent=43 // pred_check_branch
        %489 = sbr.rel (%p487) target = $region48
      $region47: #{depthwise_separable_conv.1} parent=43 // pred_region
        %p490 = scmp.lt.s32.totalorder %s16, 1
        %s491 = scalar_select %p490, %s16, 1
        %s492 = smul.addr %s491, 2
        %s493 = smul.addr %s492, 8
        %s494 = scalar_lea.vmem %s4, %s493
      $region48: #{depthwise_separable_conv.1} parent=43 // pred_fallthru
        _
    $region44: #{depthwise_separable_conv.1} parent=5 // pred_fallthru
      _
  $region6: #{depthwise_separable_conv.1} parent=0 // loop_footer
    %s14 = sadd.s32 1, %s10
  $region7: #{depthwise_separable_conv.1} parent=0 // loop_footer_branch
    %9 = sbr.rel target = $region3
  $region8: #{depthwise_separable_conv.1} parent=0 // loop_exit
    _

</llo_original>
